<compile_context>
chip_gen: v6e
topology: v6e:2x2x1
jax: 0.10.0
libtpu: 0.0.40
codegen_flags: <defaults>
</compile_context>

<pallas_src>
import functools
import math

import jax
import jax.numpy as jnp
from jax import lax
from jax.experimental import pallas as pl
from jax.experimental.pallas import tpu as pltpu


def _round_up(x, m):
    return (x + m - 1) // m * m


# ---------------------------------------------------------------------------
# Fused matmul + bias + activation Pallas kernel (conv hot path after im2col)
# ---------------------------------------------------------------------------
def _mm_kernel(a_ref, w_ref, b_ref, o_ref, *, act):
    acc = jnp.dot(a_ref[...], w_ref[...], preferred_element_type=jnp.float32)
    acc = acc + b_ref[...]
    if act == "relu":
        acc = jnp.maximum(acc, 0.0)
    o_ref[...] = acc.astype(o_ref.dtype)


def matmul_bias_act(a, w, b, act="relu"):
    """a: (M, K) f32, w: (K, N) f32, b: (N,) f32 -> (M, N) f32.

    bf16 MXU inputs, f32 accumulation, M tiled over a parallel grid, N padded to a
    lane-dense multiple of 128 (sliced off outside the kernel)."""
    M, K = a.shape
    N = w.shape[1]
    N_pad = _round_up(N, 128)

    tm = min(512, _round_up(M, 16))
    M_pad = _round_up(M, tm)
    grid_m = M_pad // tm

    a_p = jnp.pad(a, ((0, M_pad - M), (0, 0))).astype(jnp.bfloat16)
    w_p = jnp.pad(w, ((0, 0), (0, N_pad - N))).astype(jnp.bfloat16)
    b_p = jnp.pad(b, (0, N_pad - N)).reshape(1, N_pad).astype(jnp.float32)

    kernel = functools.partial(_mm_kernel, act=act)
    out = pl.pallas_call(
        kernel,
        out_shape=jax.ShapeDtypeStruct((M_pad, N_pad), jnp.float32),
        grid=(grid_m,),
        in_specs=[
            pl.BlockSpec((tm, K), lambda i: (i, 0)),
            pl.BlockSpec((K, N_pad), lambda i: (0, 0)),
            pl.BlockSpec((1, N_pad), lambda i: (0, 0)),
        ],
        out_specs=pl.BlockSpec((tm, N_pad), lambda i: (i, 0)),
        compiler_params=pltpu.CompilerParams(
            dimension_semantics=("parallel",),
            vmem_limit_bytes=64 * 1024 * 1024),
        cost_estimate=pl.CostEstimate(
            flops=2 * M_pad * K * N_pad,
            transcendentals=0,
            bytes_accessed=a_p.size * 2 + w_p.size * 2 + M_pad * N_pad * 4),
    )(a_p, w_p, b_p)
    return out[:M, :N]


def conv2d(x, w, b, stride=1, padding=1, act="relu"):
    """x: (N,H,W,Cin) NHWC, w: (kh,kw,Cin,Cout). im2col glue + Pallas matmul."""
    N, H, W, Cin = x.shape
    kh, kw, _, Cout = w.shape
    xp = jnp.pad(x, ((0, 0), (padding, padding), (padding, padding), (0, 0)))
    Ho = (H + 2 * padding - kh) // stride + 1
    Wo = (W + 2 * padding - kw) // stride + 1
    cols = []
    for i in range(kh):
        for j in range(kw):
            sl = xp[:, i: i + stride * (Ho - 1) + 1: stride,
                    j: j + stride * (Wo - 1) + 1: stride, :]
            cols.append(sl)
    patches = jnp.concatenate(cols, axis=-1)              # (N, Ho, Wo, kh*kw*Cin)
    a = patches.reshape(N * Ho * Wo, kh * kw * Cin)
    out = matmul_bias_act(a, w.reshape(kh * kw * Cin, Cout), b, act=act)
    return out.reshape(N, Ho, Wo, Cout)


def conv_transpose2d(x, w, b, stride=2, padding=1, act="relu"):
    """ConvTranspose2d(k,s=2,p=1) as zero-dilation + pad + conv. w already in
    equivalent-conv orientation (kh,kw,Cin,Cout)."""
    N, H, W, Cin = x.shape
    kh = w.shape[0]
    xd = jnp.zeros((N, (H - 1) * stride + 1, (W - 1) * stride + 1, Cin), x.dtype)
    xd = xd.at[:, ::stride, ::stride, :].set(x)
    return conv2d(xd, w, b, stride=1, padding=kh - 1 - padding, act=act)


# ---------------------------------------------------------------------------
# Modulated deformable conv (DCNv2) Pallas kernel
#   - separable one-hot bilinear gather (O(HW*(H+W)) VPU work, MXU matmuls)
#   - HW kept on the lane axis everywhere (lane-dense accumulator & store)
#   - lax.fori_loop over the K taps (unroll=3) instead of 27x Python unroll
#   - sigmoid(mask), modulation, weighting, bias and final ReLU all fused
# ---------------------------------------------------------------------------
def _deform_kernel(x_ref, off_ref, msk_ref, wd_ref, b_ref, o_ref, acc_ref,
                   *, K, kd, pad, H, W, Cin):
    HW = H * W
    qi = lax.broadcasted_iota(jnp.int32, (1, HW), 1)
    base_r = (qi // W).astype(jnp.float32)                # output row of pixel q
    base_c = (qi % W).astype(jnp.float32)                 # output col of pixel q
    rr = lax.broadcasted_iota(jnp.int32, (H, HW), 0)      # candidate source rows
    cc = lax.broadcasted_iota(jnp.int32, (W, HW), 0)      # candidate source cols
    xs = [x_ref[0, c] for c in range(Cin)]                # per-channel (H, W) planes

    acc_ref[...] = jnp.zeros_like(acc_ref)

    def tap(k, carry):
        offk = off_ref[0, k]                              # (Cin*2, HW)
        mskk = jax.nn.sigmoid(msk_ref[0, k])              # (Cin, HW)  -- sigmoid fused
        dy = (k // kd - pad).astype(jnp.float32)
        dx = (k % kd - pad).astype(jnp.float32)

        rows = []
        for c in range(Cin):                              # deformable_groups == Cin
            oy = offk[2 * c: 2 * c + 1, :]                # (1, HW)
            ox = offk[2 * c + 1: 2 * c + 2, :]
            m = mskk[c: c + 1, :]                         # (1, HW)

            py = base_r + dy + oy
            px = base_c + dx + ox
            fy = jnp.floor(py)
            fx = jnp.floor(px)
            wy1 = py - fy
            wx1 = px - fx
            i0 = fy.astype(jnp.int32)
            j0 = fx.astype(jnp.int32)

            # Separable one-hot selectors; OOB corners never match -> DCNv2 zero padding.
            ry = ((rr == i0).astype(jnp.float32) * (1.0 - wy1)
                  + (rr == (i0 + 1)).astype(jnp.float32) * wy1)        # (H, HW)
            rx = ((cc == j0).astype(jnp.float32) * (1.0 - wx1)
                  + (cc == (j0 + 1)).astype(jnp.float32) * wx1)        # (W, HW)

            colsel = jnp.dot(xs[c], rx, preferred_element_type=jnp.float32)   # (H, HW)
            sampled = jnp.sum(ry * colsel, axis=0, keepdims=True)             # (1, HW)
            rows.append(m * sampled)

        s_k = jnp.concatenate(rows, axis=0)               # (Cin, HW)
        w_k = wd_ref[k]                                   # (Cout_pad, Cin)
        acc_ref[...] += jnp.dot(w_k, s_k, preferred_element_type=jnp.float32)
        return carry

    lax.fori_loop(0, K, tap, 0, unroll=3)

    out = jnp.maximum(acc_ref[...] + b_ref[...], 0.0)     # fused F.relu on deform output
    o_ref[0] = out.astype(o_ref.dtype)


def deform_conv_pallas(x_nhwc, off, mskl, wd, bd, *, deform_ks=3):
    """x: (N,H,W,Cin), off: (N,H,W,Cin*2*K), mskl: mask logits (N,H,W,Cin*K),
    wd: (Cin*K, Cout), bd: (Cout,). Returns relu(deform_conv(x, off, sigmoid(mskl)))."""
    N, H, W, Cin = x_nhwc.shape
    K = deform_ks * deform_ks
    HW = H * W
    Cout = wd.shape[1]
    Cout_pad = _round_up(Cout, 128)

    # Wrapper-side re-layouts so the kernel never needs lane<->sublane relayouts.
    x_nchw = jnp.transpose(x_nhwc, (0, 3, 1, 2))                            # (N, Cin, H, W)
    off_r = off.reshape(N, H, W, Cin, K, 2)
    off_r = jnp.transpose(off_r, (0, 4, 3, 5, 1, 2)).reshape(N, K, Cin * 2, HW)
    msk_r = mskl.reshape(N, H, W, Cin, K)
    msk_r = jnp.transpose(msk_r, (0, 4, 3, 1, 2)).reshape(N, K, Cin, HW)
    # wd row order is c*K + k -> (K, Cout_pad, Cin) so wd_r[k, o, c] = wd[c*K + k, o]
    wd_r = jnp.transpose(wd.reshape(Cin, K, Cout), (1, 2, 0))               # (K, Cout, Cin)
    wd_r = jnp.pad(wd_r, ((0, 0), (0, Cout_pad - Cout), (0, 0)))
    bias = jnp.pad(bd, (0, Cout_pad - Cout)).reshape(Cout_pad, 1)

    kernel = functools.partial(_deform_kernel, K=K, kd=deform_ks,
                               pad=deform_ks // 2, H=H, W=W, Cin=Cin)
    out = pl.pallas_call(
        kernel,
        out_shape=jax.ShapeDtypeStruct((N, Cout_pad, HW), jnp.float32),
        grid=(N,),
        in_specs=[
            pl.BlockSpec((1, Cin, H, W), lambda n: (n, 0, 0, 0)),
            pl.BlockSpec((1, K, Cin * 2, HW), lambda n: (n, 0, 0, 0)),
            pl.BlockSpec((1, K, Cin, HW), lambda n: (n, 0, 0, 0)),
            pl.BlockSpec((K, Cout_pad, Cin), lambda n: (0, 0, 0)),
            pl.BlockSpec((Cout_pad, 1), lambda n: (0, 0)),
        ],
        out_specs=pl.BlockSpec((1, Cout_pad, HW), lambda n: (n, 0, 0)),
        scratch_shapes=[pltpu.VMEM((Cout_pad, HW), jnp.float32)],
        compiler_params=pltpu.CompilerParams(
            dimension_semantics=("parallel",),
            vmem_limit_bytes=64 * 1024 * 1024),
    )(x_nchw, off_r, msk_r, wd_r, bias)

    out = out[:, :Cout, :]                                                  # (N, Cout, HW)
    return jnp.transpose(out, (0, 2, 1)).reshape(N, H, W, Cout)


# ---------------------------------------------------------------------------
# Parameter init (synthetic, deterministic) and FA forward
# ---------------------------------------------------------------------------
def init_params(key, in_nc, out_nc, nf, nb, base_ks=3, deform_ks=3):
    K = deform_ks * deform_ks
    keys = iter(jax.random.split(key, 128))

    def conv_p(cin, cout, k=base_ks):
        scale = 0.2 / math.sqrt(k * k * cin)
        w = jax.random.normal(next(keys), (k, k, cin, cout), jnp.float32) * scale
        b = jax.random.normal(next(keys), (cout,), jnp.float32) * 0.01
        return w, b

    p = {"nb": nb, "in_nc": in_nc, "deform_ks": deform_ks}
    p["in_conv"] = conv_p(in_nc, nf)
    for i in range(1, nb):
        p[f"dn{i}"] = {"c1": conv_p(nf, nf), "c2": conv_p(nf, nf)}
        p[f"up{i}"] = {"c1": conv_p(2 * nf, nf), "t": conv_p(nf, nf, k=4)}
    p["tr"] = {"c1": conv_p(nf, nf), "c2": conv_p(nf, nf), "t": conv_p(nf, nf, k=4)}
    p["out_conv"] = conv_p(nf, nf)
    p["off_msk"] = conv_p(nf, in_nc * 3 * K)
    wd = jax.random.normal(next(keys), (in_nc * K, out_nc), jnp.float32) * (
        0.2 / math.sqrt(in_nc * K))
    bd = jax.random.normal(next(keys), (out_nc,), jnp.float32) * 0.01
    p["deform"] = (wd, bd)
    return p


def fa_forward(params, x):
    nb = params["nb"]
    in_nc = params["in_nc"]
    K = params["deform_ks"] ** 2

    w, b = params["in_conv"]
    out_lst = [conv2d(x, w, b, act="relu")]
    for i in range(1, nb):
        pi = params[f"dn{i}"]
        h = conv2d(out_lst[i - 1], *pi["c1"], stride=2, act="relu")
        h = conv2d(h, *pi["c2"], act="relu")
        out_lst.append(h)

    pt = params["tr"]
    out = conv2d(out_lst[-1], *pt["c1"], stride=2, act="relu")
    out = conv2d(out, *pt["c2"], act="relu")
    out = conv_transpose2d(out, *pt["t"], act="relu")

    for i in range(nb - 1, 0, -1):
        pi = params[f"up{i}"]
        cat = jnp.concatenate([out, out_lst[i]], axis=-1)   # channel concat (== torch dim=1)
        out = conv2d(cat, *pi["c1"], act="relu")
        out = conv_transpose2d(out, *pi["t"], act="relu")

    out = conv2d(out, *params["out_conv"], act="relu")
    off_msk = conv2d(out, *params["off_msk"], act="none")

    off = off_msk[..., : in_nc * 2 * K]
    msk_logits = off_msk[..., in_nc * 2 * K:]                # sigmoid fused into deform kernel

    wd, bd = params["deform"]
    return deform_conv_pallas(x, off, msk_logits, wd, bd,
                              deform_ks=params["deform_ks"])


if __name__ == "__main__":
    in_nc, out_nc, nf, nb = 3, 8, 16, 2
    N, H, W = 2, 16, 16

    key = jax.random.PRNGKey(0)
    kx, kp = jax.random.split(key)
    x = jax.random.normal(kx, (N, H, W, in_nc), jnp.float32)   # NHWC (torch ref is NCHW)
    params = init_params(kp, in_nc, out_nc, nf, nb)

    out = fa_forward(params, x)
    out = jax.block_until_ready(out)
    assert out.shape == (N, H, W, out_nc), out.shape
    assert bool(jnp.all(jnp.isfinite(out)))
    assert bool(jnp.all(out >= 0.0))     # final fused ReLU
    print("KERNEL_OK")
</pallas_src>

<mosaic_0001>
module attributes {stable_mosaic.version = 11 : i64} {
  func.func @_mm_kernel(%arg0: i32, %arg1: memref<512x27xbf16, #tpu.memory_space<vmem>>, %arg2: memref<27x128xbf16, #tpu.memory_space<vmem>>, %arg3: memref<1x128xf32, #tpu.memory_space<vmem>>, %arg4: memref<512x128xf32, #tpu.memory_space<vmem>>) attributes {dimension_semantics = [#tpu.dimension_semantics<parallel>], iteration_bounds = array<i64: 1>, scalar_prefetch = 0 : i64, scratch_operands = 0 : i64, tpu.core_type = #tpu.core_type<tc>, window_params = [{transform_indices = @transform_0, window_bounds = array<i64: 512, 27>}, {pipeline_mode = #tpu.pipeline_mode<synchronous>, transform_indices = @transform_1, window_bounds = array<i64: 27, 128>}, {pipeline_mode = #tpu.pipeline_mode<synchronous>, transform_indices = @transform_2, window_bounds = array<i64: 1, 128>}, {transform_indices = @transform_3, window_bounds = array<i64: 512, 128>}]} {
    %c0 = arith.constant 0 : index
    %c0_0 = arith.constant 0 : index
    %0 = vector.load %arg1[%c0, %c0_0] : memref<512x27xbf16, #tpu.memory_space<vmem>>, vector<512x27xbf16>
    %c0_1 = arith.constant 0 : index
    %c0_2 = arith.constant 0 : index
    %1 = vector.load %arg2[%c0_1, %c0_2] : memref<27x128xbf16, #tpu.memory_space<vmem>>, vector<27x128xbf16>
    %cst = arith.constant dense<0.000000e+00> : vector<512x128xf32>
    %2 = tpu.matmul %0, %1, %cst {dimension_numbers = #tpu.dot_dimension_numbers<[1], [0], [0], [1], [0, 0, 1, 1], [], []>} : vector<512x27xbf16>, vector<27x128xbf16>, vector<512x128xf32> -> vector<512x128xf32>
    %c0_3 = arith.constant 0 : index
    %c0_4 = arith.constant 0 : index
    %3 = vector.load %arg3[%c0_3, %c0_4] : memref<1x128xf32, #tpu.memory_space<vmem>>, vector<1x128xf32>
    %4 = vector.broadcast %3 : vector<1x128xf32> to vector<512x128xf32>
    %5 = arith.addf %2, %4 : vector<512x128xf32>
    %cst_5 = arith.constant 0.000000e+00 : f32
    %6 = vector.broadcast %cst_5 : f32 to vector<512x128xf32>
    %7 = arith.maximumf %5, %6 : vector<512x128xf32>
    %c0_6 = arith.constant 0 : index
    %c0_7 = arith.constant 0 : index
    %8 = vector.load %arg4[%c0_6, %c0_7] : memref<512x128xf32, #tpu.memory_space<vmem>>, vector<512x128xf32>
    tpu.vector_store %arg4[%c0_6, %c0_7], %7 {strides = array<i32>} : memref<512x128xf32, #tpu.memory_space<vmem>>, vector<512x128xf32>,
    return
  }
  func.func @transform_0(%arg0: i32) -> (i32, i32) {
    %c0_i32 = arith.constant 0 : i32
    %c0_i32_0 = arith.constant 0 : i32
    return %arg0, %c0_i32 : i32, i32
  }
  func.func @transform_1(%arg0: i32) -> (i32, i32) {
    %c0_i32 = arith.constant 0 : i32
    %c0_i32_0 = arith.constant 0 : i32
    %c0_i32_1 = arith.constant 0 : i32
    return %c0_i32, %c0_i32_0 : i32, i32
  }
  func.func @transform_2(%arg0: i32) -> (i32, i32) {
    %c0_i32 = arith.constant 0 : i32
    %c0_i32_0 = arith.constant 0 : i32
    %c0_i32_1 = arith.constant 0 : i32
    return %c0_i32, %c0_i32_0 : i32, i32
  }
  func.func @transform_3(%arg0: i32) -> (i32, i32) {
    %c0_i32 = arith.constant 0 : i32
    %c0_i32_0 = arith.constant 0 : i32
    return %arg0, %c0_i32 : i32, i32
  }
}

</mosaic_0001>

<llo_original>
// kernel: tpu_custom_call.1
$region0: #{tpu_custom_call.1}
  #allocation0 [shape = 'u32[]', space=smem, size = 0x4, offset = 0x4, fixed_abs, tag = 'smem constant byte address 0x4 - core index']
  #allocation1 [shape = 'u32[144,128]{1,0:T(1,128)}', space=vmem, size = 0x12000, scoped, tag = 'internal scratch']
  %s0 = inlined_call_operand.vmem [shape: bf16[512,27], index: 0, kind: input, shape index: {}]
  %s1 = inlined_call_operand.vmem [shape: bf16[27,128], index: 1, kind: input, shape index: {}]
  %s2 = inlined_call_operand.vmem [shape: f32[1,128], index: 2, kind: input, shape index: {}]
  %s3 = inlined_call_operand.hbm [shape: f32[512,128], index: 3, kind: output, shape index: {}]
  %s4 = sld [smem:[#allocation0]]
  $region22: #{tpu_custom_call.1} parent=0
    _
  %s6 = ssub.s32 1, %s4
  %s7 = scalar_select 0, %s6, %s4
  $region1: #{tpu_custom_call.1} parent=0
    #allocation2 [shape = 'u8[262144]{0}', space=vmem, size = 0x40000, scoped, tag = 'output window, operand 0, single buffered']
    #allocation3 [shape = 's32[1]{0}', space=sflag, size = 0x4, scoped, tag = 'scoped memory for tpu_custom_call.1']
    %8 = vsyncpa [#allocation3], 0
    // Predicated region
    $region2: #{tpu_custom_call.1} parent=1 // pred_check
      _
    $region3: #{tpu_custom_call.1} parent=1 // pred_check_branch
      %10 = sbr.rel (0) target = $region5
    $region4: #{tpu_custom_call.1} parent=1 // pred_region
      _
    $region5: #{tpu_custom_call.1} parent=1 // pred_fallthru
      _
    // Predicated region
    $region6: #{tpu_custom_call.1} parent=1 // pred_check
      _
    $region7: #{tpu_custom_call.1} parent=1 // pred_check_branch
      %12 = sbr.rel (0) target = $region9
    $region8: #{tpu_custom_call.1} parent=1 // pred_region
      _
    $region9: #{tpu_custom_call.1} parent=1 // pred_fallthru
      _
    // Predicated region
    $region10: #{tpu_custom_call.1} parent=1 // pred_check
      _
    $region11: #{tpu_custom_call.1} parent=1 // pred_check_branch
      %14 = sbr.rel (0) target = $region13
    $region12: #{tpu_custom_call.1} parent=1 // pred_region
      _
    $region13: #{tpu_custom_call.1} parent=1 // pred_fallthru
      _
    %v16 = vld [vmem:[%s0] sm:$0xf]
    %v17 = vld [vmem:[%s0 + $0x4] sm:$0xf]
    %v18 = vld [vmem:[%s0 + $0x8] sm:$0xf]
    %v19 = vld [vmem:[%s0 + $0xc] sm:$0xf]
    %v20 = vld [vmem:[%s0 + $0x10] sm:$0xf]
    %v21 = vld [vmem:[%s0 + $0x14] sm:$0xf]
    %v22 = vld [vmem:[%s0 + $0x18] sm:$0xf]
    %v23 = vld [vmem:[%s0 + $0x1c] sm:$0xf]
    %v24 = vld [vmem:[%s0 + $0x20] sm:$0xf]
    %v25 = vld [vmem:[%s0 + $0x24] sm:$0xf]
    %v26 = vld [vmem:[%s0 + $0x28] sm:$0xf]
    %v27 = vld [vmem:[%s0 + $0x2c] sm:$0xf]
    %v28 = vld [vmem:[%s0 + $0x30] sm:$0xf]
    %v29 = vld [vmem:[%s0 + $0x34] sm:$0xf]
    %v30 = vld [vmem:[%s0 + $0x38] sm:$0xf]
    %v31 = vld [vmem:[%s0 + $0x3c] sm:$0xf]
    %v32 = vld [vmem:[%s0 + $0x40] sm:$0xf]
    %v33 = vld [vmem:[%s0 + $0x44] sm:$0xf]
    %v34 = vld [vmem:[%s0 + $0x48] sm:$0xf]
    %v35 = vld [vmem:[%s0 + $0x4c] sm:$0xf]
    %v36 = vld [vmem:[%s0 + $0x50] sm:$0xf]
    %v37 = vld [vmem:[%s0 + $0x54] sm:$0xf]
    %v38 = vld [vmem:[%s0 + $0x58] sm:$0xf]
    %v39 = vld [vmem:[%s0 + $0x5c] sm:$0xf]
    %v40 = vld [vmem:[%s0 + $0x60] sm:$0xf]
    %v41 = vld [vmem:[%s0 + $0x64] sm:$0xf]
    %v42 = vld [vmem:[%s0 + $0x68] sm:$0xf]
    %v43 = vld [vmem:[%s0 + $0x6c] sm:$0xf]
    %v44 = vld [vmem:[%s0 + $0x70] sm:$0xf]
    %v45 = vld [vmem:[%s0 + $0x74] sm:$0xf]
    %v46 = vld [vmem:[%s0 + $0x78] sm:$0xf]
    %v47 = vld [vmem:[%s0 + $0x7c] sm:$0xf]
    %v48 = vld [vmem:[%s0 + $0x80] sm:$0xf]
    %v49 = vld [vmem:[%s0 + $0x84] sm:$0xf]
    %v50 = vld [vmem:[%s0 + $0x88] sm:$0xf]
    %v51 = vld [vmem:[%s0 + $0x8c] sm:$0xf]
    %v52 = vld [vmem:[%s0 + $0x90] sm:$0xf]
    %v53 = vld [vmem:[%s0 + $0x94] sm:$0xf]
    %v54 = vld [vmem:[%s0 + $0x98] sm:$0xf]
    %v55 = vld [vmem:[%s0 + $0x9c] sm:$0xf]
    %v56 = vld [vmem:[%s0 + $0xa0] sm:$0xf]
    %v57 = vld [vmem:[%s0 + $0xa4] sm:$0xf]
    %v58 = vld [vmem:[%s0 + $0xa8] sm:$0xf]
    %v59 = vld [vmem:[%s0 + $0xac] sm:$0xf]
    %v60 = vld [vmem:[%s0 + $0xb0] sm:$0xf]
    %v61 = vld [vmem:[%s0 + $0xb4] sm:$0xf]
    %v62 = vld [vmem:[%s0 + $0xb8] sm:$0xf]
    %v63 = vld [vmem:[%s0 + $0xbc] sm:$0xf]
    %v64 = vld [vmem:[%s0 + $0xc0] sm:$0xf]
    %v65 = vld [vmem:[%s0 + $0xc4] sm:$0xf]
    %v66 = vld [vmem:[%s0 + $0xc8] sm:$0xf]
    %v67 = vld [vmem:[%s0 + $0xcc] sm:$0xf]
    %v68 = vld [vmem:[%s0 + $0xd0] sm:$0xf]
    %v69 = vld [vmem:[%s0 + $0xd4] sm:$0xf]
    %v70 = vld [vmem:[%s0 + $0xd8] sm:$0xf]
    %v71 = vld [vmem:[%s0 + $0xdc] sm:$0xf]
    %v72 = vld [vmem:[%s0 + $0xe0] sm:$0xf]
    %v73 = vld [vmem:[%s0 + $0xe4] sm:$0xf]
    %v74 = vld [vmem:[%s0 + $0xe8] sm:$0xf]
    %v75 = vld [vmem:[%s0 + $0xec] sm:$0xf]
    %v76 = vld [vmem:[%s0 + $0xf0] sm:$0xf]
    %v77 = vld [vmem:[%s0 + $0xf4] sm:$0xf]
    %v78 = vld [vmem:[%s0 + $0xf8] sm:$0xf]
    %v79 = vld [vmem:[%s0 + $0xfc] sm:$0xf]
    %v80 = vld [vmem:[%s1] sm:$0xf]
    %v81 = vld [vmem:[%s1 + $0x4] sm:$0xf]
    %v82 = vld [vmem:[%s1 + $0x8] sm:$0xf]
    %v83 = vld [vmem:[%s1 + $0xc] sm:$0x3]
    %v84 = vld [vmem:[%s2] sm:$0x1]
    %v86 = vlaneseq
    %v87 = vshrl.u32 %v86, 7
    %v88 = vsub.s32 0, %v87
    %v89 = vrot.slane %v84, %v88
    %v155 = vunpack.c.l.b16 %v16
    %v156 = vunpack.c.l.b16 %v17
    %v157 = vunpack.c.l.b16 %v18
    %v158 = vunpack.c.l.b16 %v19
    %v159 = vunpack.c.l.b16 %v20
    %v160 = vunpack.c.l.b16 %v21
    %v161 = vunpack.c.l.b16 %v22
    %v162 = vunpack.c.l.b16 %v23
    %v163 = vunpack.c.l.b16 %v24
    %v164 = vunpack.c.l.b16 %v25
    %v165 = vunpack.c.l.b16 %v26
    %v166 = vunpack.c.l.b16 %v27
    %v167 = vunpack.c.l.b16 %v28
    %v168 = vunpack.c.l.b16 %v29
    %v169 = vunpack.c.l.b16 %v30
    %v170 = vunpack.c.l.b16 %v31
    %v171 = vunpack.c.l.b16 %v32
    %v172 = vunpack.c.l.b16 %v33
    %v173 = vunpack.c.l.b16 %v34
    %v174 = vunpack.c.l.b16 %v35
    %v175 = vunpack.c.l.b16 %v36
    %v176 = vunpack.c.l.b16 %v37
    %v177 = vunpack.c.l.b16 %v38
    %v178 = vunpack.c.l.b16 %v39
    %v179 = vunpack.c.l.b16 %v40
    %v180 = vunpack.c.l.b16 %v41
    %v181 = vunpack.c.l.b16 %v42
    %v182 = vunpack.c.l.b16 %v43
    %v183 = vunpack.c.l.b16 %v44
    %v184 = vunpack.c.l.b16 %v45
    %v185 = vunpack.c.l.b16 %v46
    %v186 = vunpack.c.l.b16 %v47
    %v187 = vunpack.c.l.b16 %v48
    %v188 = vunpack.c.l.b16 %v49
    %v189 = vunpack.c.l.b16 %v50
    %v190 = vunpack.c.l.b16 %v51
    %v191 = vunpack.c.l.b16 %v52
    %v192 = vunpack.c.l.b16 %v53
    %v193 = vunpack.c.l.b16 %v54
    %v194 = vunpack.c.l.b16 %v55
    %v195 = vunpack.c.l.b16 %v56
    %v196 = vunpack.c.l.b16 %v57
    %v197 = vunpack.c.l.b16 %v58
    %v198 = vunpack.c.l.b16 %v59
    %v199 = vunpack.c.l.b16 %v60
    %v200 = vunpack.c.l.b16 %v61
    %v201 = vunpack.c.l.b16 %v62
    %v202 = vunpack.c.l.b16 %v63
    %v203 = vunpack.c.l.b16 %v64
    %v204 = vunpack.c.l.b16 %v65
    %v205 = vunpack.c.l.b16 %v66
    %v206 = vunpack.c.l.b16 %v67
    %v207 = vunpack.c.l.b16 %v68
    %v208 = vunpack.c.l.b16 %v69
    %v209 = vunpack.c.l.b16 %v70
    %v210 = vunpack.c.l.b16 %v71
    %v211 = vunpack.c.l.b16 %v72
    %v212 = vunpack.c.l.b16 %v73
    %v213 = vunpack.c.l.b16 %v74
    %v214 = vunpack.c.l.b16 %v75
    %v215 = vunpack.c.l.b16 %v76
    %v216 = vunpack.c.l.b16 %v77
    %v217 = vunpack.c.l.b16 %v78
    %v218 = vunpack.c.l.b16 %v79
    %v219 = vpack.c.b16 %v156, %v155
    %v220 = vpack.c.b16 %v158, %v157
    %v221 = vpack.c.b16 %v160, %v159
    %v222 = vpack.c.b16 %v162, %v161
    %v223 = vpack.c.b16 %v164, %v163
    %v224 = vpack.c.b16 %v166, %v165
    %v225 = vpack.c.b16 %v168, %v167
    %v226 = vpack.c.b16 %v170, %v169
    %v227 = vpack.c.b16 %v172, %v171
    %v228 = vpack.c.b16 %v174, %v173
    %v229 = vpack.c.b16 %v176, %v175
    %v230 = vpack.c.b16 %v178, %v177
    %v231 = vpack.c.b16 %v180, %v179
    %v232 = vpack.c.b16 %v182, %v181
    %v233 = vpack.c.b16 %v184, %v183
    %v234 = vpack.c.b16 %v186, %v185
    %v235 = vpack.c.b16 %v188, %v187
    %v236 = vpack.c.b16 %v190, %v189
    %v237 = vpack.c.b16 %v192, %v191
    %v238 = vpack.c.b16 %v194, %v193
    %v239 = vpack.c.b16 %v196, %v195
    %v240 = vpack.c.b16 %v198, %v197
    %v241 = vpack.c.b16 %v200, %v199
    %v242 = vpack.c.b16 %v202, %v201
    %v243 = vpack.c.b16 %v204, %v203
    %v244 = vpack.c.b16 %v206, %v205
    %v245 = vpack.c.b16 %v208, %v207
    %v246 = vpack.c.b16 %v210, %v209
    %v247 = vpack.c.b16 %v212, %v211
    %v248 = vpack.c.b16 %v214, %v213
    %v249 = vpack.c.b16 %v216, %v215
    %v250 = vpack.c.b16 %v218, %v217
    %v255 = vunpack.c.l.b16 %v80
    %v256 = vunpack.c.l.b16 %v81
    %v257 = vunpack.c.l.b16 %v82
    %v258 = vunpack.c.l.b16 %v83
    %v259 = vpack.c.b16 %v256, %v255
    %v260 = vpack.c.b16 %v258, %v257
    %vm262 = vcmask 220160
    %v264 = vsel %vm262, %v219, 0
    %v267 = vsel %vm262, %v220, 0
    %v270 = vsel %vm262, %v221, 0
    %v273 = vsel %vm262, %v222, 0
    %v276 = vsel %vm262, %v223, 0
    %v279 = vsel %vm262, %v224, 0
    %v282 = vsel %vm262, %v225, 0
    %v285 = vsel %vm262, %v226, 0
    %v288 = vsel %vm262, %v227, 0
    %v291 = vsel %vm262, %v228, 0
    %v294 = vsel %vm262, %v229, 0
    %v297 = vsel %vm262, %v230, 0
    %v300 = vsel %vm262, %v231, 0
    %v303 = vsel %vm262, %v232, 0
    %v306 = vsel %vm262, %v233, 0
    %v309 = vsel %vm262, %v234, 0
    %v312 = vsel %vm262, %v235, 0
    %v315 = vsel %vm262, %v236, 0
    %v318 = vsel %vm262, %v237, 0
    %v321 = vsel %vm262, %v238, 0
    %v324 = vsel %vm262, %v239, 0
    %v327 = vsel %vm262, %v240, 0
    %v330 = vsel %vm262, %v241, 0
    %v333 = vsel %vm262, %v242, 0
    %v336 = vsel %vm262, %v243, 0
    %v339 = vsel %vm262, %v244, 0
    %v342 = vsel %vm262, %v245, 0
    %v345 = vsel %vm262, %v246, 0
    %v348 = vsel %vm262, %v247, 0
    %v351 = vsel %vm262, %v248, 0
    %v354 = vsel %vm262, %v249, 0
    %v357 = vsel %vm262, %v250, 0
    %vm359 = vcmask 1044480
    %vm360 = vcmask 1045504
    %v361 = vsel %vm359, 4294967295, 65535
    %v362 = vsel %vm360, %v361, 0
    %v364 = vand.u32 %v260, %v362
    %366 = vmatprep.subr.bf16.mxu0 0
    %367 = vmatpush1.bf16.msra.mxu0 0
    %368 = vmatprep.subr.bf16.mxu0 0
    %369 = vmatpush1.bf16.msra.mxu0 0
    %370 = vmatprep.subr.bf16.mxu0 0
    %371 = vmatpush1.bf16.msra.mxu0 0
    %372 = vmatprep.subr.bf16.mxu0 0
    %373 = vmatpush1.bf16.msra.mxu0 0
    %374 = vmatprep.subr.bf16.mxu0 0
    %375 = vmatpush1.bf16.msra.mxu0 0
    %376 = vmatprep.subr.bf16.mxu0 0
    %377 = vmatpush1.bf16.msra.mxu0 0
    %378 = vmatprep.subr.bf16.mxu0 0
    %379 = vmatpush1.bf16.msra.mxu0 %v364
    %380 = vmatprep.subr.bf16.mxu0 0
    %381 = vmatpush1.bf16.msra.mxu0 %v259
    %382 = vmatprep.subr.bf16.mxu0 0
    %383 = vmatpush2.bf16.msra.mxu0 0
    %384 = vmatprep.subr.bf16.mxu0 0
    %385 = vmatpush2.bf16.msra.mxu0 0
    %386 = vmatprep.subr.bf16.mxu0 0
    %387 = vmatpush2.bf16.msra.mxu0 0
    %388 = vmatprep.subr.bf16.mxu0 0
    %389 = vmatpush2.bf16.msra.mxu0 0
    %390 = vmatprep.subr.bf16.mxu0 0
    %391 = vmatpush2.bf16.msra.mxu0 0
    %392 = vmatprep.subr.bf16.mxu0 0
    %393 = vmatpush2.bf16.msra.mxu0 0
    %394 = vmatprep.subr.bf16.mxu0 0
    %395 = vmatpush2.bf16.msra.mxu0 0
    %396 = vmatprep.subr.bf16.mxu0 0
    %397 = vmatpush2.bf16.msra.mxu0 0
    %398 = vmatprep.mubr.bf16.mxu0 0
    %399 = vmatmul.mubr.bf16.gmra.mxu0 %v264
    %v400 = vpop.f32.mrf.mxu0
    %v401 = vadd.f32 %v89, %v400
    %v402 = vpop.f32.mrf.mxu0
    %v403 = vpop.f32.mrf.mxu0
    %v404 = vadd.f32 %v89, %v403
    %v405 = vpop.f32.mrf.mxu0
    %406 = vmatprep.mubr.bf16.mxu0 0
    %407 = vmatmul.mubr.bf16.gmra.mxu0 %v267
    %v408 = vpop.f32.mrf.mxu0
    %v409 = vadd.f32 %v89, %v408
    %v410 = vpop.f32.mrf.mxu0
    %v411 = vpop.f32.mrf.mxu0
    %v412 = vadd.f32 %v89, %v411
    %v413 = vpop.f32.mrf.mxu0
    %414 = vmatprep.mubr.bf16.mxu0 0
    %415 = vmatmul.mubr.bf16.gmra.mxu0 %v270
    %v416 = vpop.f32.mrf.mxu0
    %v417 = vadd.f32 %v89, %v416
    %v418 = vpop.f32.mrf.mxu0
    %v419 = vpop.f32.mrf.mxu0
    %v420 = vadd.f32 %v89, %v419
    %v421 = vpop.f32.mrf.mxu0
    %422 = vmatprep.mubr.bf16.mxu0 0
    %423 = vmatmul.mubr.bf16.gmra.mxu0 %v273
    %v424 = vpop.f32.mrf.mxu0
    %v425 = vadd.f32 %v89, %v424
    %v426 = vpop.f32.mrf.mxu0
    %v427 = vpop.f32.mrf.mxu0
    %v428 = vadd.f32 %v89, %v427
    %v429 = vpop.f32.mrf.mxu0
    %430 = vmatprep.mubr.bf16.mxu0 0
    %431 = vmatmul.mubr.bf16.gmra.mxu0 %v276
    %v432 = vpop.f32.mrf.mxu0
    %v433 = vadd.f32 %v89, %v432
    %v434 = vpop.f32.mrf.mxu0
    %v435 = vpop.f32.mrf.mxu0
    %v436 = vadd.f32 %v89, %v435
    %v437 = vpop.f32.mrf.mxu0
    %438 = vmatprep.mubr.bf16.mxu0 0
    %439 = vmatmul.mubr.bf16.gmra.mxu0 %v279
    %v440 = vpop.f32.mrf.mxu0
    %v441 = vadd.f32 %v89, %v440
    %v442 = vpop.f32.mrf.mxu0
    %v443 = vpop.f32.mrf.mxu0
    %v444 = vadd.f32 %v89, %v443
    %v445 = vpop.f32.mrf.mxu0
    %446 = vmatprep.mubr.bf16.mxu0 0
    %447 = vmatmul.mubr.bf16.gmra.mxu0 %v282
    %v448 = vpop.f32.mrf.mxu0
    %v449 = vadd.f32 %v89, %v448
    %v450 = vpop.f32.mrf.mxu0
    %v451 = vpop.f32.mrf.mxu0
    %v452 = vadd.f32 %v89, %v451
    %v453 = vpop.f32.mrf.mxu0
    %454 = vmatprep.mubr.bf16.mxu0 0
    %455 = vmatmul.mubr.bf16.gmra.mxu0 %v285
    %v456 = vpop.f32.mrf.mxu0
    %v457 = vadd.f32 %v89, %v456
    %v458 = vpop.f32.mrf.mxu0
    %v459 = vpop.f32.mrf.mxu0
    %v460 = vadd.f32 %v89, %v459
    %v461 = vpop.f32.mrf.mxu0
    %462 = vmatprep.mubr.bf16.mxu0 0
    %463 = vmatmul.mubr.bf16.gmra.mxu0 %v288
    %v464 = vpop.f32.mrf.mxu0
    %v465 = vadd.f32 %v89, %v464
    %v466 = vpop.f32.mrf.mxu0
    %v467 = vpop.f32.mrf.mxu0
    %v468 = vadd.f32 %v89, %v467
    %v469 = vpop.f32.mrf.mxu0
    %470 = vmatprep.mubr.bf16.mxu0 0
    %471 = vmatmul.mubr.bf16.gmra.mxu0 %v291
    %v472 = vpop.f32.mrf.mxu0
    %v473 = vadd.f32 %v89, %v472
    %v474 = vpop.f32.mrf.mxu0
    %v475 = vpop.f32.mrf.mxu0
    %v476 = vadd.f32 %v89, %v475
    %v477 = vpop.f32.mrf.mxu0
    %478 = vmatprep.mubr.bf16.mxu0 0
    %479 = vmatmul.mubr.bf16.gmra.mxu0 %v294
    %v480 = vpop.f32.mrf.mxu0
    %v481 = vadd.f32 %v89, %v480
    %v482 = vpop.f32.mrf.mxu0
    %v483 = vpop.f32.mrf.mxu0
    %v484 = vadd.f32 %v89, %v483
    %v485 = vpop.f32.mrf.mxu0
    %486 = vmatprep.mubr.bf16.mxu0 0
    %487 = vmatmul.mubr.bf16.gmra.mxu0 %v297
    %v488 = vpop.f32.mrf.mxu0
    %v489 = vadd.f32 %v89, %v488
    %v490 = vpop.f32.mrf.mxu0
    %v491 = vpop.f32.mrf.mxu0
    %v492 = vadd.f32 %v89, %v491
    %v493 = vpop.f32.mrf.mxu0
    %494 = vmatprep.mubr.bf16.mxu0 0
    %495 = vmatmul.mubr.bf16.gmra.mxu0 %v300
    %v496 = vpop.f32.mrf.mxu0
    %v497 = vadd.f32 %v89, %v496
    %v498 = vpop.f32.mrf.mxu0
    %v499 = vpop.f32.mrf.mxu0
    %v500 = vadd.f32 %v89, %v499
    %v501 = vpop.f32.mrf.mxu0
    %502 = vmatprep.mubr.bf16.mxu0 0
    %503 = vmatmul.mubr.bf16.gmra.mxu0 %v303
    %v504 = vpop.f32.mrf.mxu0
    %v505 = vadd.f32 %v89, %v504
    %v506 = vpop.f32.mrf.mxu0
    %v507 = vpop.f32.mrf.mxu0
    %v508 = vadd.f32 %v89, %v507
    %v509 = vpop.f32.mrf.mxu0
    %510 = vmatprep.mubr.bf16.mxu0 0
    %511 = vmatmul.mubr.bf16.gmra.mxu0 %v306
    %v512 = vpop.f32.mrf.mxu0
    %v513 = vadd.f32 %v89, %v512
    %v514 = vpop.f32.mrf.mxu0
    %v515 = vpop.f32.mrf.mxu0
    %v516 = vadd.f32 %v89, %v515
    %v517 = vpop.f32.mrf.mxu0
    %518 = vmatprep.mubr.bf16.mxu0 0
    %519 = vmatmul.mubr.bf16.gmra.mxu0 %v309
    %v520 = vpop.f32.mrf.mxu0
    %v521 = vadd.f32 %v89, %v520
    %v522 = vpop.f32.mrf.mxu0
    %v523 = vpop.f32.mrf.mxu0
    %v524 = vadd.f32 %v89, %v523
    %v525 = vpop.f32.mrf.mxu0
    %526 = vmatprep.mubr.bf16.mxu0 0
    %527 = vmatmul.mubr.bf16.gmra.mxu0 %v312
    %v528 = vpop.f32.mrf.mxu0
    %v529 = vadd.f32 %v89, %v528
    %v530 = vpop.f32.mrf.mxu0
    %v531 = vpop.f32.mrf.mxu0
    %v532 = vadd.f32 %v89, %v531
    %v533 = vpop.f32.mrf.mxu0
    %534 = vmatprep.mubr.bf16.mxu0 0
    %535 = vmatmul.mubr.bf16.gmra.mxu0 %v315
    %v536 = vpop.f32.mrf.mxu0
    %v537 = vadd.f32 %v89, %v536
    %v538 = vpop.f32.mrf.mxu0
    %v539 = vpop.f32.mrf.mxu0
    %v540 = vadd.f32 %v89, %v539
    %v541 = vpop.f32.mrf.mxu0
    %542 = vmatprep.mubr.bf16.mxu0 0
    %543 = vmatmul.mubr.bf16.gmra.mxu0 %v318
    %v544 = vpop.f32.mrf.mxu0
    %v545 = vadd.f32 %v89, %v544
    %v546 = vpop.f32.mrf.mxu0
    %v547 = vpop.f32.mrf.mxu0
    %v548 = vadd.f32 %v89, %v547
    %v549 = vpop.f32.mrf.mxu0
    %550 = vmatprep.mubr.bf16.mxu0 0
    %551 = vmatmul.mubr.bf16.gmra.mxu0 %v321
    %v552 = vpop.f32.mrf.mxu0
    %v553 = vadd.f32 %v89, %v552
    %v554 = vpop.f32.mrf.mxu0
    %v555 = vpop.f32.mrf.mxu0
    %v556 = vadd.f32 %v89, %v555
    %v557 = vpop.f32.mrf.mxu0
    %558 = vmatprep.mubr.bf16.mxu0 0
    %559 = vmatmul.mubr.bf16.gmra.mxu0 %v324
    %v560 = vpop.f32.mrf.mxu0
    %v561 = vadd.f32 %v89, %v560
    %v562 = vpop.f32.mrf.mxu0
    %v563 = vpop.f32.mrf.mxu0
    %v564 = vadd.f32 %v89, %v563
    %v565 = vpop.f32.mrf.mxu0
    %566 = vmatprep.mubr.bf16.mxu0 0
    %567 = vmatmul.mubr.bf16.gmra.mxu0 %v327
    %v568 = vpop.f32.mrf.mxu0
    %v569 = vadd.f32 %v89, %v568
    %v570 = vpop.f32.mrf.mxu0
    %v571 = vpop.f32.mrf.mxu0
    %v572 = vadd.f32 %v89, %v571
    %v573 = vpop.f32.mrf.mxu0
    %574 = vmatprep.mubr.bf16.mxu0 0
    %575 = vmatmul.mubr.bf16.gmra.mxu0 %v330
    %v576 = vpop.f32.mrf.mxu0
    %v577 = vadd.f32 %v89, %v576
    %v578 = vpop.f32.mrf.mxu0
    %v579 = vpop.f32.mrf.mxu0
    %v580 = vadd.f32 %v89, %v579
    %v581 = vpop.f32.mrf.mxu0
    %582 = vmatprep.mubr.bf16.mxu0 0
    %583 = vmatmul.mubr.bf16.gmra.mxu0 %v333
    %v584 = vpop.f32.mrf.mxu0
    %v585 = vadd.f32 %v89, %v584
    %v586 = vpop.f32.mrf.mxu0
    %v587 = vpop.f32.mrf.mxu0
    %v588 = vadd.f32 %v89, %v587
    %v589 = vpop.f32.mrf.mxu0
    %590 = vmatprep.mubr.bf16.mxu0 0
    %591 = vmatmul.mubr.bf16.gmra.mxu0 %v336
    %v592 = vpop.f32.mrf.mxu0
    %v593 = vadd.f32 %v89, %v592
    %v594 = vpop.f32.mrf.mxu0
    %v595 = vpop.f32.mrf.mxu0
    %v596 = vadd.f32 %v89, %v595
    %v597 = vpop.f32.mrf.mxu0
    %598 = vmatprep.mubr.bf16.mxu0 0
    %599 = vmatmul.mubr.bf16.gmra.mxu0 %v339
    %v600 = vpop.f32.mrf.mxu0
    %v601 = vadd.f32 %v89, %v600
    %v602 = vpop.f32.mrf.mxu0
    %v603 = vpop.f32.mrf.mxu0
    %v604 = vadd.f32 %v89, %v603
    %v605 = vpop.f32.mrf.mxu0
    %606 = vmatprep.mubr.bf16.mxu0 0
    %607 = vmatmul.mubr.bf16.gmra.mxu0 %v342
    %v608 = vpop.f32.mrf.mxu0
    %v609 = vadd.f32 %v89, %v608
    %v610 = vpop.f32.mrf.mxu0
    %v611 = vpop.f32.mrf.mxu0
    %v612 = vadd.f32 %v89, %v611
    %v613 = vpop.f32.mrf.mxu0
    %614 = vmatprep.mubr.bf16.mxu0 0
    %615 = vmatmul.mubr.bf16.gmra.mxu0 %v345
    %v616 = vpop.f32.mrf.mxu0
    %v617 = vadd.f32 %v89, %v616
    %v618 = vpop.f32.mrf.mxu0
    %v619 = vpop.f32.mrf.mxu0
    %v620 = vadd.f32 %v89, %v619
    %v621 = vpop.f32.mrf.mxu0
    %622 = vmatprep.mubr.bf16.mxu0 0
    %623 = vmatmul.mubr.bf16.gmra.mxu0 %v348
    %v624 = vpop.f32.mrf.mxu0
    %v625 = vadd.f32 %v89, %v624
    %v626 = vpop.f32.mrf.mxu0
    %v627 = vpop.f32.mrf.mxu0
    %v628 = vadd.f32 %v89, %v627
    %v629 = vpop.f32.mrf.mxu0
    %630 = vmatprep.mubr.bf16.mxu0 0
    %631 = vmatmul.mubr.bf16.gmra.mxu0 %v351
    %v632 = vpop.f32.mrf.mxu0
    %v633 = vadd.f32 %v89, %v632
    %v634 = vpop.f32.mrf.mxu0
    %v635 = vpop.f32.mrf.mxu0
    %v636 = vadd.f32 %v89, %v635
    %v637 = vpop.f32.mrf.mxu0
    %638 = vmatprep.mubr.bf16.mxu0 0
    %639 = vmatmul.mubr.bf16.gmra.mxu0 %v354
    %v640 = vpop.f32.mrf.mxu0
    %v641 = vadd.f32 %v89, %v640
    %v642 = vpop.f32.mrf.mxu0
    %v643 = vpop.f32.mrf.mxu0
    %v644 = vadd.f32 %v89, %v643
    %v645 = vpop.f32.mrf.mxu0
    %646 = vmatprep.mubr.bf16.mxu0 0
    %647 = vmatmul.mubr.bf16.gmra.mxu0 %v357
    %v648 = vpop.f32.mrf.mxu0
    %v649 = vadd.f32 %v89, %v648
    %v650 = vpop.f32.mrf.mxu0
    %v651 = vpop.f32.mrf.mxu0
    %v652 = vadd.f32 %v89, %v651
    %v653 = vpop.f32.mrf.mxu0
    %654 = vdwg.mxu0
    %v655 = vmax.f32 %v401, 0.0
    %v656 = vmax.f32 %v404, 0.0
    %v657 = vmax.f32 %v409, 0.0
    %v658 = vmax.f32 %v412, 0.0
    %v659 = vmax.f32 %v417, 0.0
    %v660 = vmax.f32 %v420, 0.0
    %v661 = vmax.f32 %v425, 0.0
    %v662 = vmax.f32 %v428, 0.0
    %v663 = vmax.f32 %v433, 0.0
    %v664 = vmax.f32 %v436, 0.0
    %v665 = vmax.f32 %v441, 0.0
    %v666 = vmax.f32 %v444, 0.0
    %v667 = vmax.f32 %v449, 0.0
    %v668 = vmax.f32 %v452, 0.0
    %v669 = vmax.f32 %v457, 0.0
    %v670 = vmax.f32 %v460, 0.0
    %v671 = vmax.f32 %v465, 0.0
    %v672 = vmax.f32 %v468, 0.0
    %v673 = vmax.f32 %v473, 0.0
    %v674 = vmax.f32 %v476, 0.0
    %v675 = vmax.f32 %v481, 0.0
    %v676 = vmax.f32 %v484, 0.0
    %v677 = vmax.f32 %v489, 0.0
    %v678 = vmax.f32 %v492, 0.0
    %v679 = vmax.f32 %v497, 0.0
    %v680 = vmax.f32 %v500, 0.0
    %v681 = vmax.f32 %v505, 0.0
    %v682 = vmax.f32 %v508, 0.0
    %v683 = vmax.f32 %v513, 0.0
    %v684 = vmax.f32 %v516, 0.0
    %v685 = vmax.f32 %v521, 0.0
    %v686 = vmax.f32 %v524, 0.0
    %v687 = vmax.f32 %v529, 0.0
    %v688 = vmax.f32 %v532, 0.0
    %v689 = vmax.f32 %v537, 0.0
    %v690 = vmax.f32 %v540, 0.0
    %v691 = vmax.f32 %v545, 0.0
    %v692 = vmax.f32 %v548, 0.0
    %v693 = vmax.f32 %v553, 0.0
    %v694 = vmax.f32 %v556, 0.0
    %v695 = vmax.f32 %v561, 0.0
    %v696 = vmax.f32 %v564, 0.0
    %v697 = vmax.f32 %v569, 0.0
    %v698 = vmax.f32 %v572, 0.0
    %v699 = vmax.f32 %v577, 0.0
    %v700 = vmax.f32 %v580, 0.0
    %v701 = vmax.f32 %v585, 0.0
    %v702 = vmax.f32 %v588, 0.0
    %v703 = vmax.f32 %v593, 0.0
    %v704 = vmax.f32 %v596, 0.0
    %v705 = vmax.f32 %v601, 0.0
    %v706 = vmax.f32 %v604, 0.0
    %v707 = vmax.f32 %v609, 0.0
    %v708 = vmax.f32 %v612, 0.0
    %v709 = vmax.f32 %v617, 0.0
    %v710 = vmax.f32 %v620, 0.0
    %v711 = vmax.f32 %v625, 0.0
    %v712 = vmax.f32 %v628, 0.0
    %v713 = vmax.f32 %v633, 0.0
    %v714 = vmax.f32 %v636, 0.0
    %v715 = vmax.f32 %v641, 0.0
    %v716 = vmax.f32 %v644, 0.0
    %v717 = vmax.f32 %v649, 0.0
    %v718 = vmax.f32 %v652, 0.0
    %719 = vst [vmem:[#allocation2] sm:$0xff] %v655
    %720 = vst [vmem:[#allocation2 + $0x8] sm:$0xff] %v656
    %721 = vst [vmem:[#allocation2 + $0x10] sm:$0xff] %v657
    %722 = vst [vmem:[#allocation2 + $0x18] sm:$0xff] %v658
    %723 = vst [vmem:[#allocation2 + $0x20] sm:$0xff] %v659
    %724 = vst [vmem:[#allocation2 + $0x28] sm:$0xff] %v660
    %725 = vst [vmem:[#allocation2 + $0x30] sm:$0xff] %v661
    %726 = vst [vmem:[#allocation2 + $0x38] sm:$0xff] %v662
    %727 = vst [vmem:[#allocation2 + $0x40] sm:$0xff] %v663
    %728 = vst [vmem:[#allocation2 + $0x48] sm:$0xff] %v664
    %729 = vst [vmem:[#allocation2 + $0x50] sm:$0xff] %v665
    %730 = vst [vmem:[#allocation2 + $0x58] sm:$0xff] %v666
    %731 = vst [vmem:[#allocation2 + $0x60] sm:$0xff] %v667
    %732 = vst [vmem:[#allocation2 + $0x68] sm:$0xff] %v668
    %733 = vst [vmem:[#allocation2 + $0x70] sm:$0xff] %v669
    %734 = vst [vmem:[#allocation2 + $0x78] sm:$0xff] %v670
    %735 = vst [vmem:[#allocation2 + $0x80] sm:$0xff] %v671
    %736 = vst [vmem:[#allocation2 + $0x88] sm:$0xff] %v672
    %737 = vst [vmem:[#allocation2 + $0x90] sm:$0xff] %v673
    %738 = vst [vmem:[#allocation2 + $0x98] sm:$0xff] %v674
    %739 = vst [vmem:[#allocation2 + $0xa0] sm:$0xff] %v675
    %740 = vst [vmem:[#allocation2 + $0xa8] sm:$0xff] %v676
    %741 = vst [vmem:[#allocation2 + $0xb0] sm:$0xff] %v677
    %742 = vst [vmem:[#allocation2 + $0xb8] sm:$0xff] %v678
    %743 = vst [vmem:[#allocation2 + $0xc0] sm:$0xff] %v679
    %744 = vst [vmem:[#allocation2 + $0xc8] sm:$0xff] %v680
    %745 = vst [vmem:[#allocation2 + $0xd0] sm:$0xff] %v681
    %746 = vst [vmem:[#allocation2 + $0xd8] sm:$0xff] %v682
    %747 = vst [vmem:[#allocation2 + $0xe0] sm:$0xff] %v683
    %748 = vst [vmem:[#allocation2 + $0xe8] sm:$0xff] %v684
    %749 = vst [vmem:[#allocation2 + $0xf0] sm:$0xff] %v685
    %750 = vst [vmem:[#allocation2 + $0xf8] sm:$0xff] %v686
    %751 = vst [vmem:[#allocation2 + $0x100] sm:$0xff] %v687
    %752 = vst [vmem:[#allocation2 + $0x108] sm:$0xff] %v688
    %753 = vst [vmem:[#allocation2 + $0x110] sm:$0xff] %v689
    %754 = vst [vmem:[#allocation2 + $0x118] sm:$0xff] %v690
    %755 = vst [vmem:[#allocation2 + $0x120] sm:$0xff] %v691
    %756 = vst [vmem:[#allocation2 + $0x128] sm:$0xff] %v692
    %757 = vst [vmem:[#allocation2 + $0x130] sm:$0xff] %v693
    %758 = vst [vmem:[#allocation2 + $0x138] sm:$0xff] %v694
    %759 = vst [vmem:[#allocation2 + $0x140] sm:$0xff] %v695
    %760 = vst [vmem:[#allocation2 + $0x148] sm:$0xff] %v696
    %761 = vst [vmem:[#allocation2 + $0x150] sm:$0xff] %v697
    %762 = vst [vmem:[#allocation2 + $0x158] sm:$0xff] %v698
    %763 = vst [vmem:[#allocation2 + $0x160] sm:$0xff] %v699
    %764 = vst [vmem:[#allocation2 + $0x168] sm:$0xff] %v700
    %765 = vst [vmem:[#allocation2 + $0x170] sm:$0xff] %v701
    %766 = vst [vmem:[#allocation2 + $0x178] sm:$0xff] %v702
    %767 = vst [vmem:[#allocation2 + $0x180] sm:$0xff] %v703
    %768 = vst [vmem:[#allocation2 + $0x188] sm:$0xff] %v704
    %769 = vst [vmem:[#allocation2 + $0x190] sm:$0xff] %v705
    %770 = vst [vmem:[#allocation2 + $0x198] sm:$0xff] %v706
    %771 = vst [vmem:[#allocation2 + $0x1a0] sm:$0xff] %v707
    %772 = vst [vmem:[#allocation2 + $0x1a8] sm:$0xff] %v708
    %773 = vst [vmem:[#allocation2 + $0x1b0] sm:$0xff] %v709
    %774 = vst [vmem:[#allocation2 + $0x1b8] sm:$0xff] %v710
    %775 = vst [vmem:[#allocation2 + $0x1c0] sm:$0xff] %v711
    %776 = vst [vmem:[#allocation2 + $0x1c8] sm:$0xff] %v712
    %777 = vst [vmem:[#allocation2 + $0x1d0] sm:$0xff] %v713
    %778 = vst [vmem:[#allocation2 + $0x1d8] sm:$0xff] %v714
    %779 = vst [vmem:[#allocation2 + $0x1e0] sm:$0xff] %v715
    %780 = vst [vmem:[#allocation2 + $0x1e8] sm:$0xff] %v716
    %781 = vst [vmem:[#allocation2 + $0x1f0] sm:$0xff] %v717
    %782 = vst [vmem:[#allocation2 + $0x1f8] sm:$0xff] %v718
    // Predicated region
    $region14: #{tpu_custom_call.1} parent=1 // pred_check
      _
    $region15: #{tpu_custom_call.1} parent=1 // pred_check_branch
      %784 = sbr.rel (0) target = $region17
    $region16: #{tpu_custom_call.1} parent=1 // pred_region
      %s786 = ssub.s32 8192, 8192
      %787 = vsyncadd [#allocation3], %s786
      %s788 = sshll.u32 [#allocation2], 4
      %s789 = int_to_ptr.vmem [resolvable:$true] %s788
      %794 = dma.vmem_to_hbm [thread:$0]  %s789, 8192, %s3, [#allocation3], 128, 128, 8
    $region17: #{tpu_custom_call.1} parent=1 // pred_fallthru
      _
    // Predicated region
    $region18: #{tpu_custom_call.1} parent=1 // pred_check
      _
    $region19: #{tpu_custom_call.1} parent=1 // pred_check_branch
      %796 = sbr.rel (0) target = $region21
    $region20: #{tpu_custom_call.1} parent=1 // pred_region
      %797 = dma.done [#allocation3], 8192
    $region21: #{tpu_custom_call.1} parent=1 // pred_fallthru
      _
    %798 = vsyncpa [#allocation3], 1

</llo_original>
